<compile_context>
chip_gen: v7x
topology: tpu7x:2x2x1
jax: 0.10.0
libtpu: 0.0.40
codegen_flags: <defaults>
</compile_context>

<pallas_src>
import functools

import jax
import jax.numpy as jnp
from jax.experimental import pallas as pl
from jax.experimental.pallas import tpu as pltpu


def _round_up(v, m):
    return (v + m - 1) // m * m


def rnn_chunk_kernel(x_ref, wih_ref, whh_ref, out_ref, h_ref, xp_ref, *, t_blk, b_blk):
    """One time-chunk of the RNN recurrence for one batch tile.

    x_ref  : (1, t_blk*b_blk, I)    raw inputs; rows ordered (t, j) within the chunk
    wih_ref: (I, Hp)                W_ih^T, resident across the whole grid
    whh_ref: (Hp, Hp)               W_hh^T, resident across the whole grid
    out_ref: (1, t_blk*b_blk, Hp)   hidden states, same row layout as x
    h_ref  : (b_blk, Hp) f32        carried hidden state (persists across time chunks)
    xp_ref : (t_blk*b_blk, Hp) f32  chunk input projection scratch
    """
    # New batch tile -> reset the carried hidden state (h_0 = 0).
    @pl.when(pl.program_id(1) == 0)
    def _():
        h_ref[...] = jnp.zeros_like(h_ref)

    wih = wih_ref[...]
    # Fused input projection for the whole chunk: one large MXU matmul, off the
    # serial recurrence path.
    xp_ref[...] = jnp.dot(x_ref[0].astype(wih.dtype), wih,
                          preferred_element_type=jnp.float32)

    whh = whh_ref[...]  # stays in VMEM for the whole chunk
    # TODO(synk): inspect the bundle dump; if Mosaic re-pushes the identical RHS every
    # step, switch to pltpu.matmul_push_rhs / matmul_acc_lhs / matmul_pop to keep
    # W_hh^T stationary in the MXU weight registers across the chunk.

    UNROLL = 4  # t_blk is always a multiple of 8, so this divides evenly

    def outer(i, h):
        base = i * (UNROLL * b_blk)
        for u in range(UNROLL):
            row = pl.multiple_of(base + u * b_blk, b_blk)
            pre = xp_ref[pl.ds(row, b_blk), :] + jnp.dot(
                h.astype(whh.dtype), whh, preferred_element_type=jnp.float32)
            h = jnp.tanh(pre)
            # Full, unmasked (b_blk, Hp) tile store (time-major row layout).
            out_ref[0, pl.ds(row, b_blk), :] = h.astype(out_ref.dtype)
        return h

    h_ref[...] = jax.lax.fori_loop(0, t_blk // UNROLL, outer, h_ref[...])


def rnn_forward(x, w_ih, w_hh, *, t_blk=None, compute_dtype=jnp.float32):
    """Forward of torch.nn.RNN(input_size, hidden_size, bias=False, batch_first=True).

    x    : (B, S, I) float32
    w_ih : (H, I)    weight_ih_l0
    w_hh : (H, H)    weight_hh_l0
    Returns (output, h_n): output (B, S, H), h_n (1, B, H).
    """
    B, S, I = x.shape
    H = w_ih.shape[0]
    cdt = compute_dtype

    Hp = _round_up(H, 128)

    # --- Batch tiling: fill MXU rows, but keep >= 2 tiles when B allows (v7x: 2 TCs).
    Bp8 = _round_up(B, 8)
    b_blk = min(Bp8, 128)
    if Bp8 > 8 and Bp8 // b_blk < 2:
        b_blk = _round_up((Bp8 + 1) // 2, 8)
    Bp = _round_up(B, b_blk)
    n_b = Bp // b_blk

    # --- Time chunking: amortize per-grid-step overhead under a VMEM budget.
    cdt_bytes = jnp.finfo(cdt).bits // 8
    io_bytes = jnp.finfo(x.dtype).bits // 8

    def vmem_estimate(tb):
        return (Hp * Hp * cdt_bytes                 # resident W_hh^T
                + I * Hp * cdt_bytes                # resident W_ih^T
                + 2 * tb * b_blk * I * io_bytes     # double-buffered x chunk
                + 2 * tb * b_blk * Hp * io_bytes    # double-buffered out chunk
                + tb * b_blk * Hp * 4               # xp scratch (f32)
                + b_blk * Hp * 4)                   # carried h (f32)

    if t_blk is None:
        t_blk = min(_round_up(S, 8), 128)
        while t_blk > 8 and vmem_estimate(t_blk) > 24 * 1024 * 1024:
            t_blk = _round_up(t_blk // 2, 8)
    else:
        t_blk = _round_up(t_blk, 8)
    Sp = _round_up(S, t_blk)
    n_c = Sp // t_blk

    vmem_limit = int(min(max(2 * vmem_estimate(t_blk), 32 * 1024 * 1024),
                         64 * 1024 * 1024))

    # --- Wrapper-side layout: pad B/S (cheap, no lane remap), then per batch tile
    # order rows time-major so each step's b_blk rows are one contiguous tile.
    x_p = jnp.pad(x, ((0, Bp - B), (0, Sp - S), (0, 0)))                  # (Bp, Sp, I)
    x_r = (x_p.reshape(n_b, b_blk, Sp, I)
               .transpose(0, 2, 1, 3)
               .reshape(n_b, Sp * b_blk, I))                              # (n_b, Sp*b_blk, I)

    # Weights: transpose + zero-pad so padded hidden lanes stay exactly 0 (tanh(0)=0).
    wih_t = jnp.pad(w_ih.T.astype(cdt), ((0, 0), (0, Hp - H)))            # (I, Hp)
    whh_t = jnp.pad(w_hh.T.astype(cdt), ((0, Hp - H), (0, Hp - H)))       # (Hp, Hp)

    out_r = pl.pallas_call(
        functools.partial(rnn_chunk_kernel, t_blk=t_blk, b_blk=b_blk),
        out_shape=jax.ShapeDtypeStruct((n_b, Sp * b_blk, Hp), x.dtype),
        grid_spec=pltpu.PrefetchScalarGridSpec(
            num_scalar_prefetch=0,
            grid=(n_b, n_c),   # (batch tiles: independent, time chunks: recurrence)
            in_specs=[
                pl.BlockSpec((1, t_blk * b_blk, I), lambda b, c: (b, c, 0)),  # x chunk
                pl.BlockSpec((I, Hp), lambda b, c: (0, 0)),                   # W_ih^T resident
                pl.BlockSpec((Hp, Hp), lambda b, c: (0, 0)),                  # W_hh^T resident
            ],
            out_specs=pl.BlockSpec((1, t_blk * b_blk, Hp), lambda b, c: (b, c, 0)),
            scratch_shapes=[
                pltpu.VMEM((b_blk, Hp), jnp.float32),              # carried h
                pltpu.VMEM((t_blk * b_blk, Hp), jnp.float32),      # chunk input projection
            ],
        ),
        compiler_params=pltpu.CompilerParams(
            # Batch tiles can shard across v7x's 2 TensorCores; time is sequential.
            dimension_semantics=("parallel", "arbitrary"),
            vmem_limit_bytes=vmem_limit,
        ),
    )(x_r, wih_t, whh_t)

    # Undo the tile layout and strip padding.
    out = (out_r.reshape(n_b, Sp, b_blk, Hp)
                 .transpose(0, 2, 1, 3)
                 .reshape(Bp, Sp, Hp))
    output = out[:B, :S, :H]
    h_n = output[:, S - 1, :][None]          # (1, B, H) final hidden state
    return output, h_n


def rnn_reference(x, w_ih, w_hh):
    """Pure-JAX reference (lax.scan) for correctness check."""
    B, S, I = x.shape
    H = w_ih.shape[0]

    def step(h, x_t):
        h_new = jnp.tanh(x_t @ w_ih.T + h @ w_hh.T)
        return h_new, h_new

    h0 = jnp.zeros((B, H), dtype=jnp.float32)
    h_last, outs = jax.lax.scan(step, h0, jnp.transpose(x, (1, 0, 2)))
    return jnp.transpose(outs, (1, 0, 2)), h_last[None]


if __name__ == "__main__":
    key = jax.random.PRNGKey(0)

    # Config 1: small shapes consistent with the module's forward (batch, seq, input).
    B, S, I, H = 2, 8, 4, 32
    k1, k2, k3, key = jax.random.split(key, 4)
    x = jax.random.normal(k1, (B, S, I), dtype=jnp.float32)
    # nn.RNN weight shapes: weight_ih_l0 -> (hidden, input), weight_hh_l0 -> (hidden, hidden)
    w_ih = jax.random.normal(k2, (H, I), dtype=jnp.float32) * 0.1
    w_hh = jax.random.normal(k3, (H, H), dtype=jnp.float32) * 0.1

    out_ref_, h_n_ref_ = rnn_reference(x, w_ih, w_hh)

    # f32 path (matches PyTorch semantics)
    out, h_n = rnn_forward(x, w_ih, w_hh)
    out = jax.block_until_ready(out)
    h_n = jax.block_until_ready(h_n)
    assert out.shape == (B, S, H) and h_n.shape == (1, B, H)
    assert jnp.allclose(out, out_ref_, atol=1e-4, rtol=1e-4)
    assert jnp.allclose(h_n, h_n_ref_, atol=1e-4, rtol=1e-4)

    # bf16 MXU path (recommended on v6e/v7x); carry / accumulation stay f32.
    out_bf, h_n_bf = rnn_forward(x, w_ih, w_hh, compute_dtype=jnp.bfloat16)
    out_bf = jax.block_until_ready(out_bf)
    assert jnp.allclose(out_bf, out_ref_, atol=5e-2, rtol=5e-2)
    assert jnp.allclose(h_n_bf, h_n_ref_, atol=5e-2, rtol=5e-2)

    # Config 2: exercises multiple batch tiles, multiple time chunks, and B/S/H padding.
    B2, S2, I2, H2 = 12, 40, 8, 100
    k1, k2, k3, key = jax.random.split(key, 4)
    x2 = jax.random.normal(k1, (B2, S2, I2), dtype=jnp.float32)
    w_ih2 = jax.random.normal(k2, (H2, I2), dtype=jnp.float32) * 0.1
    w_hh2 = jax.random.normal(k3, (H2, H2), dtype=jnp.float32) * 0.1

    out2_ref_, h_n2_ref_ = rnn_reference(x2, w_ih2, w_hh2)
    out2, h_n2 = rnn_forward(x2, w_ih2, w_hh2, t_blk=16)
    out2 = jax.block_until_ready(out2)
    h_n2 = jax.block_until_ready(h_n2)
    assert out2.shape == (B2, S2, H2) and h_n2.shape == (1, B2, H2)
    assert jnp.allclose(out2, out2_ref_, atol=1e-3, rtol=1e-3)
    assert jnp.allclose(h_n2, h_n2_ref_, atol=1e-3, rtol=1e-3)

    print("KERNEL_OK")
</pallas_src>

<mosaic_0001>
module attributes {stable_mosaic.version = 11 : i64} {
  func.func @rnn_chunk_kernel(%arg0: i32, %arg1: i32, %arg2: memref<1x64x4xf32, #tpu.memory_space<vmem>>, %arg3: memref<4x128xf32, #tpu.memory_space<vmem>>, %arg4: memref<128x128xf32, #tpu.memory_space<vmem>>, %arg5: memref<1x64x128xf32, #tpu.memory_space<vmem>>, %arg6: memref<8x128xf32, #tpu.memory_space<vmem>>, %arg7: memref<64x128xf32, #tpu.memory_space<vmem>>) attributes {dimension_semantics = [#tpu.dimension_semantics<parallel>, #tpu.dimension_semantics<arbitrary>], iteration_bounds = array<i64: 1, 1>, scalar_prefetch = 0 : i64, scratch_operands = 2 : i64, tpu.core_type = #tpu.core_type<tc>, window_params = [{transform_indices = @transform_0, window_bounds = array<i64: 1, 64, 4>}, {pipeline_mode = #tpu.pipeline_mode<synchronous>, transform_indices = @transform_1, window_bounds = array<i64: 4, 128>}, {pipeline_mode = #tpu.pipeline_mode<synchronous>, transform_indices = @transform_2, window_bounds = array<i64: 128, 128>}, {transform_indices = @transform_3, window_bounds = array<i64: 1, 64, 128>}]} {
    %c0_i32 = arith.constant 0 : i32
    %0 = arith.cmpi eq, %arg1, %c0_i32 : i32
    %1 = arith.extui %0 : i1 to i32
    %c0_i32_0 = arith.constant 0 : i32
    %2 = arith.cmpi ne, %1, %c0_i32_0 : i32
    scf.if %2 {
      %cst_15 = arith.constant 0.000000e+00 : f32
      %13 = vector.broadcast %cst_15 : f32 to vector<8x128xf32>
      %c0_16 = arith.constant 0 : index
      %c0_17 = arith.constant 0 : index
      %14 = vector.load %arg6[%c0_16, %c0_17] : memref<8x128xf32, #tpu.memory_space<vmem>>, vector<8x128xf32>
      tpu.vector_store %arg6[%c0_16, %c0_17], %13 {strides = array<i32>} : memref<8x128xf32, #tpu.memory_space<vmem>>, vector<8x128xf32>,
    } else {
    }
    %c0 = arith.constant 0 : index
    %c0_1 = arith.constant 0 : index
    %3 = vector.load %arg3[%c0, %c0_1] : memref<4x128xf32, #tpu.memory_space<vmem>>, vector<4x128xf32>
    %c0_2 = arith.constant 0 : index
    %c0_3 = arith.constant 0 : index
    %c0_4 = arith.constant 0 : index
    %4 = vector.load %arg2[%c0_2, %c0_3, %c0_4] : memref<1x64x4xf32, #tpu.memory_space<vmem>>, vector<1x64x4xf32>
    %5 = vector.shape_cast %4 : vector<1x64x4xf32> to vector<64x4xf32>
    %cst = arith.constant dense<0.000000e+00> : vector<64x128xf32>
    %6 = tpu.matmul %5, %3, %cst {dimension_numbers = #tpu.dot_dimension_numbers<[1], [0], [0], [1], [0, 0, 1, 1], [], []>} : vector<64x4xf32>, vector<4x128xf32>, vector<64x128xf32> -> vector<64x128xf32>
    %c0_5 = arith.constant 0 : index
    %c0_6 = arith.constant 0 : index
    %7 = vector.load %arg7[%c0_5, %c0_6] : memref<64x128xf32, #tpu.memory_space<vmem>>, vector<64x128xf32>
    tpu.vector_store %arg7[%c0_5, %c0_6], %6 {strides = array<i32>} : memref<64x128xf32, #tpu.memory_space<vmem>>, vector<64x128xf32>,
    %c0_7 = arith.constant 0 : index
    %c0_8 = arith.constant 0 : index
    %8 = vector.load %arg4[%c0_7, %c0_8] : memref<128x128xf32, #tpu.memory_space<vmem>>, vector<128x128xf32>
    %c0_9 = arith.constant 0 : index
    %c0_10 = arith.constant 0 : index
    %9 = vector.load %arg6[%c0_9, %c0_10] : memref<8x128xf32, #tpu.memory_space<vmem>>, vector<8x128xf32>
    %c0_i32_11 = arith.constant 0 : i32
    %c2_i32 = arith.constant 2 : i32
    %10 = arith.addi %c0_i32_11, %c2_i32 : i32
    %c1_i32 = arith.constant 1 : i32
    %11 = scf.for %arg8 = %c0_i32_11 to %10 step %c1_i32 iter_args(%arg9 = %9) -> (vector<8x128xf32>)  : i32 {
      %c32_i32 = arith.constant 32 : i32
      %13 = arith.muli %arg8, %c32_i32 : i32
      %c0_i32_15 = arith.constant 0 : i32
      %14 = arith.addi %13, %c0_i32_15 : i32
      %15 = tpu.assume_multiple %14, 8 : i32
      %16 = arith.index_cast %15 : i32 to index
      %c0_16 = arith.constant 0 : index
      %17 = vector.load %arg7[%16, %c0_16] : memref<64x128xf32, #tpu.memory_space<vmem>>, vector<8x128xf32>
      %cst_17 = arith.constant dense<0.000000e+00> : vector<8x128xf32>
      %18 = tpu.matmul %arg9, %8, %cst_17 {dimension_numbers = #tpu.dot_dimension_numbers<[1], [0], [0], [1], [0, 0, 1, 1], [], []>} : vector<8x128xf32>, vector<128x128xf32>, vector<8x128xf32> -> vector<8x128xf32>
      %19 = arith.addf %17, %18 : vector<8x128xf32>
      %20 = math.tanh %19 : vector<8x128xf32>
      %c0_18 = arith.constant 0 : index
      %21 = arith.index_cast %15 : i32 to index
      %c0_19 = arith.constant 0 : index
      %22 = vector.load %arg5[%c0_18, %21, %c0_19] : memref<1x64x128xf32, #tpu.memory_space<vmem>>, vector<1x8x128xf32>
      %23 = vector.shape_cast %22 : vector<1x8x128xf32> to vector<8x128xf32>
      %24 = vector.shape_cast %20 : vector<8x128xf32> to vector<1x8x128xf32>
      tpu.vector_store %arg5[%c0_18, %21, %c0_19], %24 {strides = array<i32>} : memref<1x64x128xf32, #tpu.memory_space<vmem>>, vector<1x8x128xf32>,
      %c8_i32 = arith.constant 8 : i32
      %25 = arith.addi %13, %c8_i32 : i32
      %26 = tpu.assume_multiple %25, 8 : i32
      %27 = arith.index_cast %26 : i32 to index
      %c0_20 = arith.constant 0 : index
      %28 = vector.load %arg7[%27, %c0_20] : memref<64x128xf32, #tpu.memory_space<vmem>>, vector<8x128xf32>
      %cst_21 = arith.constant dense<0.000000e+00> : vector<8x128xf32>
      %29 = tpu.matmul %20, %8, %cst_21 {dimension_numbers = #tpu.dot_dimension_numbers<[1], [0], [0], [1], [0, 0, 1, 1], [], []>} : vector<8x128xf32>, vector<128x128xf32>, vector<8x128xf32> -> vector<8x128xf32>
      %30 = arith.addf %28, %29 : vector<8x128xf32>
      %31 = math.tanh %30 : vector<8x128xf32>
      %c0_22 = arith.constant 0 : index
      %32 = arith.index_cast %26 : i32 to index
      %c0_23 = arith.constant 0 : index
      %33 = vector.load %arg5[%c0_22, %32, %c0_23] : memref<1x64x128xf32, #tpu.memory_space<vmem>>, vector<1x8x128xf32>
      %34 = vector.shape_cast %33 : vector<1x8x128xf32> to vector<8x128xf32>
      %35 = vector.shape_cast %31 : vector<8x128xf32> to vector<1x8x128xf32>
      tpu.vector_store %arg5[%c0_22, %32, %c0_23], %35 {strides = array<i32>} : memref<1x64x128xf32, #tpu.memory_space<vmem>>, vector<1x8x128xf32>,
      %c16_i32 = arith.constant 16 : i32
      %36 = arith.addi %13, %c16_i32 : i32
      %37 = tpu.assume_multiple %36, 8 : i32
      %38 = arith.index_cast %37 : i32 to index
      %c0_24 = arith.constant 0 : index
      %39 = vector.load %arg7[%38, %c0_24] : memref<64x128xf32, #tpu.memory_space<vmem>>, vector<8x128xf32>
      %cst_25 = arith.constant dense<0.000000e+00> : vector<8x128xf32>
      %40 = tpu.matmul %31, %8, %cst_25 {dimension_numbers = #tpu.dot_dimension_numbers<[1], [0], [0], [1], [0, 0, 1, 1], [], []>} : vector<8x128xf32>, vector<128x128xf32>, vector<8x128xf32> -> vector<8x128xf32>
      %41 = arith.addf %39, %40 : vector<8x128xf32>
      %42 = math.tanh %41 : vector<8x128xf32>
      %c0_26 = arith.constant 0 : index
      %43 = arith.index_cast %37 : i32 to index
      %c0_27 = arith.constant 0 : index
      %44 = vector.load %arg5[%c0_26, %43, %c0_27] : memref<1x64x128xf32, #tpu.memory_space<vmem>>, vector<1x8x128xf32>
      %45 = vector.shape_cast %44 : vector<1x8x128xf32> to vector<8x128xf32>
      %46 = vector.shape_cast %42 : vector<8x128xf32> to vector<1x8x128xf32>
      tpu.vector_store %arg5[%c0_26, %43, %c0_27], %46 {strides = array<i32>} : memref<1x64x128xf32, #tpu.memory_space<vmem>>, vector<1x8x128xf32>,
      %c24_i32 = arith.constant 24 : i32
      %47 = arith.addi %13, %c24_i32 : i32
      %48 = tpu.assume_multiple %47, 8 : i32
      %49 = arith.index_cast %48 : i32 to index
      %c0_28 = arith.constant 0 : index
      %50 = vector.load %arg7[%49, %c0_28] : memref<64x128xf32, #tpu.memory_space<vmem>>, vector<8x128xf32>
      %cst_29 = arith.constant dense<0.000000e+00> : vector<8x128xf32>
      %51 = tpu.matmul %42, %8, %cst_29 {dimension_numbers = #tpu.dot_dimension_numbers<[1], [0], [0], [1], [0, 0, 1, 1], [], []>} : vector<8x128xf32>, vector<128x128xf32>, vector<8x128xf32> -> vector<8x128xf32>
      %52 = arith.addf %50, %51 : vector<8x128xf32>
      %53 = math.tanh %52 : vector<8x128xf32>
      %c0_30 = arith.constant 0 : index
      %54 = arith.index_cast %48 : i32 to index
      %c0_31 = arith.constant 0 : index
      %55 = vector.load %arg5[%c0_30, %54, %c0_31] : memref<1x64x128xf32, #tpu.memory_space<vmem>>, vector<1x8x128xf32>
      %56 = vector.shape_cast %55 : vector<1x8x128xf32> to vector<8x128xf32>
      %57 = vector.shape_cast %53 : vector<8x128xf32> to vector<1x8x128xf32>
      tpu.vector_store %arg5[%c0_30, %54, %c0_31], %57 {strides = array<i32>} : memref<1x64x128xf32, #tpu.memory_space<vmem>>, vector<1x8x128xf32>,
      scf.yield %53 : vector<8x128xf32>
    }
    %c2_i32_12 = arith.constant 2 : i32
    %c0_13 = arith.constant 0 : index
    %c0_14 = arith.constant 0 : index
    %12 = vector.load %arg6[%c0_13, %c0_14] : memref<8x128xf32, #tpu.memory_space<vmem>>, vector<8x128xf32>
    tpu.vector_store %arg6[%c0_13, %c0_14], %11 {strides = array<i32>} : memref<8x128xf32, #tpu.memory_space<vmem>>, vector<8x128xf32>,
    return
  }
  func.func @transform_0(%arg0: i32, %arg1: i32) -> (i32, i32, i32) {
    %c0_i32 = arith.constant 0 : i32
    %c0_i32_0 = arith.constant 0 : i32
    return %arg0, %arg1, %c0_i32 : i32, i32, i32
  }
  func.func @transform_1(%arg0: i32, %arg1: i32) -> (i32, i32) {
    %c0_i32 = arith.constant 0 : i32
    %c0_i32_0 = arith.constant 0 : i32
    %c0_i32_1 = arith.constant 0 : i32
    return %c0_i32, %c0_i32_0 : i32, i32
  }
  func.func @transform_2(%arg0: i32, %arg1: i32) -> (i32, i32) {
    %c0_i32 = arith.constant 0 : i32
    %c0_i32_0 = arith.constant 0 : i32
    %c0_i32_1 = arith.constant 0 : i32
    return %c0_i32, %c0_i32_0 : i32, i32
  }
  func.func @transform_3(%arg0: i32, %arg1: i32) -> (i32, i32, i32) {
    %c0_i32 = arith.constant 0 : i32
    %c0_i32_0 = arith.constant 0 : i32
    return %arg0, %arg1, %c0_i32 : i32, i32, i32
  }
}

</mosaic_0001>

<llo_original>
// kernel: tpu_custom_call.1
$region0: #{tpu_custom_call.1}
  #allocation0 [shape = 'u32[]', space=smem, size = 0x4, offset = 0x4, fixed_abs, tag = 'smem constant byte address 0x4 - core index']
  #allocation1 [shape = 'u32[144,128]{1,0:T(1,128)}', space=vmem, size = 0x12000, scoped, tag = 'internal scratch']
  #allocation2 [shape = 'f32[8,128]{1,0:T(8,128)}', space=vmem, size = 0x1000, scoped, tag = 'scratch operand']
  #allocation3 [shape = 'f32[64,128]{1,0:T(8,128)}', space=vmem, size = 0x8000, scoped, tag = 'scratch operand']
  %s0 = inlined_call_operand.vmem [shape: f32[1,64,4], index: 0, kind: input, shape index: {}]
  %s1 = inlined_call_operand.vmem [shape: f32[4,128], index: 1, kind: input, shape index: {}]
  %s2 = inlined_call_operand.hbm [shape: f32[128,128], index: 2, kind: input, shape index: {}]
  %s3 = inlined_call_operand.hbm [shape: f32[1,64,128], index: 3, kind: output, shape index: {}]
  %s4 = sld [smem:[#allocation0]]
  $region37: #{tpu_custom_call.1} parent=0
    _
  %s6 = ssub.s32 1, %s4
  %s7 = scalar_select 0, %s6, %s4
  $region1: #{tpu_custom_call.1} parent=0
    #allocation4 [shape = 'u8[65536]{0}', space=vmem, size = 0x10000, scoped, tag = 'input window, operand 2, single buffered']
    #allocation5 [shape = 's32[1]{0}', space=sflag, size = 0x4, scoped, tag = 'scoped memory for tpu_custom_call.1']
    #allocation6 [shape = 's32[1]{0}', space=sflag, size = 0x4, scoped, tag = 'scoped memory for tpu_custom_call.1']
    #allocation7 [shape = 'u8[32768]{0}', space=vmem, size = 0x8000, scoped, tag = 'output window, operand 0, single buffered']
    %8 = vsyncpa [#allocation5], 0
    %9 = vsyncpa [#allocation6], 0
    // Predicated region
    $region2: #{tpu_custom_call.1} parent=1 // pred_check
      _
    $region3: #{tpu_custom_call.1} parent=1 // pred_check_branch
      %11 = sbr.rel (0) target = $region5
    $region4: #{tpu_custom_call.1} parent=1 // pred_region
      _
    $region5: #{tpu_custom_call.1} parent=1 // pred_fallthru
      _
    // Predicated region
    $region6: #{tpu_custom_call.1} parent=1 // pred_check
      _
    $region7: #{tpu_custom_call.1} parent=1 // pred_check_branch
      %13 = sbr.rel (0) target = $region9
    $region8: #{tpu_custom_call.1} parent=1 // pred_region
      _
    $region9: #{tpu_custom_call.1} parent=1 // pred_fallthru
      _
    // Predicated region
    $region10: #{tpu_custom_call.1} parent=1 // pred_check
      _
    $region11: #{tpu_custom_call.1} parent=1 // pred_check_branch
      %15 = sbr.rel (0) target = $region13
    $region12: #{tpu_custom_call.1} parent=1 // pred_region
      %s17 = ssub.s32 2048, 2048
      %18 = vsyncadd [#allocation5], %s17
      %s19 = sshll.u32 [#allocation4], 4
      %s20 = int_to_ptr.vmem [resolvable:$true] %s19
      %25 = dma.hbm_to_vmem [thread:$0]  %s2, 2048, %s20, [#allocation5], 128, 128, 8
    $region13: #{tpu_custom_call.1} parent=1 // pred_fallthru
      _
    // Predicated region
    $region14: #{tpu_custom_call.1} parent=1 // pred_check
      _
    $region15: #{tpu_custom_call.1} parent=1 // pred_check_branch
      %27 = sbr.rel (0) target = $region17
    $region16: #{tpu_custom_call.1} parent=1 // pred_region
      %28 = dma.done [#allocation5], 2048
    $region17: #{tpu_custom_call.1} parent=1 // pred_fallthru
      _
    %p29 = scmp.eq.s32.totalorder 0, 0
    // Predicated region
    $region18: #{tpu_custom_call.1} parent=1 // pred_check
      %p30 = pneg %p29
    $region19: #{tpu_custom_call.1} parent=1 // pred_check_branch
      %32 = sbr.rel (%p30) target = $region21
    $region20: #{tpu_custom_call.1} parent=1 // pred_region
      %33 = vst [vmem:[#allocation2] sm:$0xff] 0.0
    $region21: #{tpu_custom_call.1} parent=1 // pred_fallthru
      _
    %v34 = vld [vmem:[%s1] sm:$0xf]
    %v35 = vld [vmem:[%s0] sm:$0xff]
    %v36 = vld [vmem:[%s0 + $0x8] sm:$0xff]
    %v37 = vld [vmem:[%s0 + $0x10] sm:$0xff]
    %v38 = vld [vmem:[%s0 + $0x18] sm:$0xff]
    %v39 = vld [vmem:[%s0 + $0x20] sm:$0xff]
    %v40 = vld [vmem:[%s0 + $0x28] sm:$0xff]
    %v41 = vld [vmem:[%s0 + $0x30] sm:$0xff]
    %v42 = vld [vmem:[%s0 + $0x38] sm:$0xff]
    %vm43 = vcmask 31744
    %v45 = vsel %vm43, %v35, 0
    %v48 = vsel %vm43, %v36, 0
    %v51 = vsel %vm43, %v37, 0
    %v54 = vsel %vm43, %v38, 0
    %v57 = vsel %vm43, %v39, 0
    %v60 = vsel %vm43, %v40, 0
    %v63 = vsel %vm43, %v41, 0
    %v66 = vsel %vm43, %v42, 0
    %vm68 = vcmask 1043456
    %v70 = vsel %vm68, %v34, 0
    %72 = vmatprep.subr.mxu0 0.0
    %73 = vmatpush1.msra.mxu0 %v70
    %74 = vmatprep.subr.mxu0 0.0
    %75 = vmatpush1.msra.mxu0 0.0
    %76 = vmatprep.subr.mxu0 0.0
    %77 = vmatpush1.msra.mxu0 0.0
    %78 = vmatprep.subr.mxu0 0.0
    %79 = vmatpush1.msra.mxu0 0.0
    %80 = vmatprep.subr.mxu0 0.0
    %81 = vmatpush1.msra.mxu0 0.0
    %82 = vmatprep.subr.mxu0 0.0
    %83 = vmatpush1.msra.mxu0 0.0
    %84 = vmatprep.subr.mxu0 0.0
    %85 = vmatpush1.msra.mxu0 0.0
    %86 = vmatprep.subr.mxu0 0.0
    %87 = vmatpush1.msra.mxu0 0.0
    %88 = vmatprep.subr.mxu0 0.0
    %89 = vmatpush1.msra.mxu0 0.0
    %90 = vmatprep.subr.mxu0 0.0
    %91 = vmatpush1.msra.mxu0 0.0
    %92 = vmatprep.subr.mxu0 0.0
    %93 = vmatpush1.msra.mxu0 0.0
    %94 = vmatprep.subr.mxu0 0.0
    %95 = vmatpush1.msra.mxu0 0.0
    %96 = vmatprep.subr.mxu0 0.0
    %97 = vmatpush1.msra.mxu0 0.0
    %98 = vmatprep.subr.mxu0 0.0
    %99 = vmatpush1.msra.mxu0 0.0
    %100 = vmatprep.subr.mxu0 0.0
    %101 = vmatpush1.msra.mxu0 0.0
    %102 = vmatprep.subr.mxu0 0.0
    %103 = vmatpush1.msra.mxu0 0.0
    %104 = vmatprep.subr.mxu0 0.0
    %105 = vmatpush1.msra.mxu0 0.0
    %106 = vmatprep.subr.mxu0 0.0
    %107 = vmatpush1.msra.mxu0 0.0
    %108 = vmatprep.subr.mxu0 0.0
    %109 = vmatpush1.msra.mxu0 0.0
    %110 = vmatprep.subr.mxu0 0.0
    %111 = vmatpush1.msra.mxu0 0.0
    %112 = vmatprep.subr.mxu0 0.0
    %113 = vmatpush1.msra.mxu0 0.0
    %114 = vmatprep.subr.mxu0 0.0
    %115 = vmatpush1.msra.mxu0 0.0
    %116 = vmatprep.subr.mxu0 0.0
    %117 = vmatpush1.msra.mxu0 0.0
    %118 = vmatprep.subr.mxu0 0.0
    %119 = vmatpush1.msra.mxu0 0.0
    %120 = vmatprep.subr.mxu0 0.0
    %121 = vmatpush1.msra.mxu0 0.0
    %122 = vmatprep.subr.mxu0 0.0
    %123 = vmatpush1.msra.mxu0 0.0
    %124 = vmatprep.subr.mxu0 0.0
    %125 = vmatpush1.msra.mxu0 0.0
    %126 = vmatprep.subr.mxu0 0.0
    %127 = vmatpush1.msra.mxu0 0.0
    %128 = vmatprep.subr.mxu0 0.0
    %129 = vmatpush1.msra.mxu0 0.0
    %130 = vmatprep.subr.mxu0 0.0
    %131 = vmatpush1.msra.mxu0 0.0
    %132 = vmatprep.subr.mxu0 0.0
    %133 = vmatpush1.msra.mxu0 0.0
    %134 = vmatprep.subr.mxu0 0.0
    %135 = vmatpush1.msra.mxu0 0.0
    %136 = vmatprep.mubr.f32.mxu0 0.0
    %137 = vmatmul.mubr.f32.gmra.mrb[0].mxu0 %v45
    %v138 = vpop.f32.mrb[0].mxu0
    %v139 = vadd.f32 0.0, %v138
    %v140 = vpop.f32.mrb[0].mxu0
    %141 = vmatprep.mubr.f32.mxu0 0.0
    %142 = vmatmul.mubr.f32.gmra.mrb[0].mxu0 %v48
    %v143 = vpop.f32.mrb[0].mxu0
    %v144 = vadd.f32 0.0, %v143
    %v145 = vpop.f32.mrb[0].mxu0
    %146 = vmatprep.mubr.f32.mxu0 0.0
    %147 = vmatmul.mubr.f32.gmra.mrb[0].mxu0 %v51
    %v148 = vpop.f32.mrb[0].mxu0
    %v149 = vadd.f32 0.0, %v148
    %v150 = vpop.f32.mrb[0].mxu0
    %151 = vmatprep.mubr.f32.mxu0 0.0
    %152 = vmatmul.mubr.f32.gmra.mrb[0].mxu0 %v54
    %v153 = vpop.f32.mrb[0].mxu0
    %v154 = vadd.f32 0.0, %v153
    %v155 = vpop.f32.mrb[0].mxu0
    %156 = vmatprep.mubr.f32.mxu0 0.0
    %157 = vmatmul.mubr.f32.gmra.mrb[0].mxu0 %v57
    %v158 = vpop.f32.mrb[0].mxu0
    %v159 = vadd.f32 0.0, %v158
    %v160 = vpop.f32.mrb[0].mxu0
    %161 = vmatprep.mubr.f32.mxu0 0.0
    %162 = vmatmul.mubr.f32.gmra.mrb[0].mxu0 %v60
    %v163 = vpop.f32.mrb[0].mxu0
    %v164 = vadd.f32 0.0, %v163
    %v165 = vpop.f32.mrb[0].mxu0
    %166 = vmatprep.mubr.f32.mxu0 0.0
    %167 = vmatmul.mubr.f32.gmra.mrb[0].mxu0 %v63
    %v168 = vpop.f32.mrb[0].mxu0
    %v169 = vadd.f32 0.0, %v168
    %v170 = vpop.f32.mrb[0].mxu0
    %171 = vmatprep.mubr.f32.mxu0 0.0
    %172 = vmatmul.mubr.f32.gmra.mrb[0].mxu0 %v66
    %v173 = vpop.f32.mrb[0].mxu0
    %v174 = vadd.f32 0.0, %v173
    %v175 = vpop.f32.mrb[0].mxu0
    %176 = vdwg.mxu0
    %177 = vst [vmem:[#allocation3] sm:$0xff] %v139
    %178 = vst [vmem:[#allocation3 + $0x8] sm:$0xff] %v144
    %179 = vst [vmem:[#allocation3 + $0x10] sm:$0xff] %v149
    %180 = vst [vmem:[#allocation3 + $0x18] sm:$0xff] %v154
    %181 = vst [vmem:[#allocation3 + $0x20] sm:$0xff] %v159
    %182 = vst [vmem:[#allocation3 + $0x28] sm:$0xff] %v164
    %183 = vst [vmem:[#allocation3 + $0x30] sm:$0xff] %v169
    %184 = vst [vmem:[#allocation3 + $0x38] sm:$0xff] %v174
    %v185 = vld [vmem:[#allocation4] sm:$0xff]
    %v186 = vld [vmem:[#allocation4 + $0x8] sm:$0xff]
    %v187 = vld [vmem:[#allocation4 + $0x10] sm:$0xff]
    %v188 = vld [vmem:[#allocation4 + $0x18] sm:$0xff]
    %v189 = vld [vmem:[#allocation4 + $0x20] sm:$0xff]
    %v190 = vld [vmem:[#allocation4 + $0x28] sm:$0xff]
    %v191 = vld [vmem:[#allocation4 + $0x30] sm:$0xff]
    %v192 = vld [vmem:[#allocation4 + $0x38] sm:$0xff]
    %v193 = vld [vmem:[#allocation4 + $0x40] sm:$0xff]
    %v194 = vld [vmem:[#allocation4 + $0x48] sm:$0xff]
    %v195 = vld [vmem:[#allocation4 + $0x50] sm:$0xff]
    %v196 = vld [vmem:[#allocation4 + $0x58] sm:$0xff]
    %v197 = vld [vmem:[#allocation4 + $0x60] sm:$0xff]
    %v198 = vld [vmem:[#allocation4 + $0x68] sm:$0xff]
    %v199 = vld [vmem:[#allocation4 + $0x70] sm:$0xff]
    %v200 = vld [vmem:[#allocation4 + $0x78] sm:$0xff]
    %v201 = vld [vmem:[#allocation2] sm:$0xff]
    loop: start=0, step=1, limit=2
    $region22: #{tpu_custom_call.1} parent=1 // loop_pre_header
      _
    $region23: #{tpu_custom_call.1} parent=1 // loop_header
      %s203 = sphi 0, %s207
      %p204 = scmp.ge.s32.totalorder %s203, 2
      %v208 = vphi %v201, %v514
    $region24: #{tpu_custom_call.1} parent=1 // loop_header_branch
      %206 = sbr.rel (%p204) target = $region28
    $region25: #{tpu_custom_call.1} parent=1 // loop_body
      %s209 = smul.u32 %s203, 32
      %s210 = scalar_lea.vmem [#allocation3], %s209
      %v211 = vld [vmem:[%s210] sm:$0xff]
      %212 = vmatprep.subr.mxu0 0.0
      %213 = vmatpush1.msra.mxu0 %v185
      %214 = vmatprep.subr.mxu0 0.0
      %215 = vmatpush1.msra.mxu0 %v186
      %216 = vmatprep.subr.mxu0 0.0
      %217 = vmatpush1.msra.mxu0 %v187
      %218 = vmatprep.subr.mxu0 0.0
      %219 = vmatpush1.msra.mxu0 %v188
      %220 = vmatprep.subr.mxu0 0.0
      %221 = vmatpush1.msra.mxu0 %v189
      %222 = vmatprep.subr.mxu0 0.0
      %223 = vmatpush1.msra.mxu0 %v190
      %224 = vmatprep.subr.mxu0 0.0
      %225 = vmatpush1.msra.mxu0 %v191
      %226 = vmatprep.subr.mxu0 0.0
      %227 = vmatpush1.msra.mxu0 %v192
      %228 = vmatprep.subr.mxu0 0.0
      %229 = vmatpush1.msra.mxu0 %v193
      %230 = vmatprep.subr.mxu0 0.0
      %231 = vmatpush1.msra.mxu0 %v194
      %232 = vmatprep.subr.mxu0 0.0
      %233 = vmatpush1.msra.mxu0 %v195
      %234 = vmatprep.subr.mxu0 0.0
      %235 = vmatpush1.msra.mxu0 %v196
      %236 = vmatprep.subr.mxu0 0.0
      %237 = vmatpush1.msra.mxu0 %v197
      %238 = vmatprep.subr.mxu0 0.0
      %239 = vmatpush1.msra.mxu0 %v198
      %240 = vmatprep.subr.mxu0 0.0
      %241 = vmatpush1.msra.mxu0 %v199
      %242 = vmatprep.subr.mxu0 0.0
      %243 = vmatpush1.msra.mxu0 %v200
      %244 = vmatprep.subr.mxu0 0.0
      %245 = vmatpush1.msra.mxu0 0.0
      %246 = vmatprep.subr.mxu0 0.0
      %247 = vmatpush1.msra.mxu0 0.0
      %248 = vmatprep.subr.mxu0 0.0
      %249 = vmatpush1.msra.mxu0 0.0
      %250 = vmatprep.subr.mxu0 0.0
      %251 = vmatpush1.msra.mxu0 0.0
      %252 = vmatprep.subr.mxu0 0.0
      %253 = vmatpush1.msra.mxu0 0.0
      %254 = vmatprep.subr.mxu0 0.0
      %255 = vmatpush1.msra.mxu0 0.0
      %256 = vmatprep.subr.mxu0 0.0
      %257 = vmatpush1.msra.mxu0 0.0
      %258 = vmatprep.subr.mxu0 0.0
      %259 = vmatpush1.msra.mxu0 0.0
      %260 = vmatprep.subr.mxu0 0.0
      %261 = vmatpush1.msra.mxu0 0.0
      %262 = vmatprep.subr.mxu0 0.0
      %263 = vmatpush1.msra.mxu0 0.0
      %264 = vmatprep.subr.mxu0 0.0
      %265 = vmatpush1.msra.mxu0 0.0
      %266 = vmatprep.subr.mxu0 0.0
      %267 = vmatpush1.msra.mxu0 0.0
      %268 = vmatprep.subr.mxu0 0.0
      %269 = vmatpush1.msra.mxu0 0.0
      %270 = vmatprep.subr.mxu0 0.0
      %271 = vmatpush1.msra.mxu0 0.0
      %272 = vmatprep.subr.mxu0 0.0
      %273 = vmatpush1.msra.mxu0 0.0
      %274 = vmatprep.subr.mxu0 0.0
      %275 = vmatpush1.msra.mxu0 0.0
      %276 = vmatprep.mubr.f32.mxu0 0.0
      %277 = vmatmul.mubr.f32.gmra.mrb[0].mxu0 %v208
      %v278 = vpop.f32.mrb[0].mxu0
      %v279 = vadd.f32 0.0, %v278
      %v280 = vpop.f32.mrb[0].mxu0
      %281 = vdwg.mxu0
      %v282 = vadd.f32 %v211, %v279
      %v283 = vtanh.pop %v282
      %s284 = scalar_lea.vmem [#allocation7], %s209
      %285 = vst [vmem:[%s284] sm:$0xff] %v283
      %s286 = sadd.s32 %s209, 8
      %s287 = scalar_lea.vmem [#allocation3], %s286
      %v288 = vld [vmem:[%s287] sm:$0xff]
      %289 = vmatprep.subr.mxu0 0.0
      %290 = vmatpush1.msra.mxu0 %v185
      %291 = vmatprep.subr.mxu0 0.0
      %292 = vmatpush1.msra.mxu0 %v186
      %293 = vmatprep.subr.mxu0 0.0
      %294 = vmatpush1.msra.mxu0 %v187
      %295 = vmatprep.subr.mxu0 0.0
      %296 = vmatpush1.msra.mxu0 %v188
      %297 = vmatprep.subr.mxu0 0.0
      %298 = vmatpush1.msra.mxu0 %v189
      %299 = vmatprep.subr.mxu0 0.0
      %300 = vmatpush1.msra.mxu0 %v190
      %301 = vmatprep.subr.mxu0 0.0
      %302 = vmatpush1.msra.mxu0 %v191
      %303 = vmatprep.subr.mxu0 0.0
      %304 = vmatpush1.msra.mxu0 %v192
      %305 = vmatprep.subr.mxu0 0.0
      %306 = vmatpush1.msra.mxu0 %v193
      %307 = vmatprep.subr.mxu0 0.0
      %308 = vmatpush1.msra.mxu0 %v194
      %309 = vmatprep.subr.mxu0 0.0
      %310 = vmatpush1.msra.mxu0 %v195
      %311 = vmatprep.subr.mxu0 0.0
      %312 = vmatpush1.msra.mxu0 %v196
      %313 = vmatprep.subr.mxu0 0.0
      %314 = vmatpush1.msra.mxu0 %v197
      %315 = vmatprep.subr.mxu0 0.0
      %316 = vmatpush1.msra.mxu0 %v198
      %317 = vmatprep.subr.mxu0 0.0
      %318 = vmatpush1.msra.mxu0 %v199
      %319 = vmatprep.subr.mxu0 0.0
      %320 = vmatpush1.msra.mxu0 %v200
      %321 = vmatprep.subr.mxu0 0.0
      %322 = vmatpush1.msra.mxu0 0.0
      %323 = vmatprep.subr.mxu0 0.0
      %324 = vmatpush1.msra.mxu0 0.0
      %325 = vmatprep.subr.mxu0 0.0
      %326 = vmatpush1.msra.mxu0 0.0
      %327 = vmatprep.subr.mxu0 0.0
      %328 = vmatpush1.msra.mxu0 0.0
      %329 = vmatprep.subr.mxu0 0.0
      %330 = vmatpush1.msra.mxu0 0.0
      %331 = vmatprep.subr.mxu0 0.0
      %332 = vmatpush1.msra.mxu0 0.0
      %333 = vmatprep.subr.mxu0 0.0
      %334 = vmatpush1.msra.mxu0 0.0
      %335 = vmatprep.subr.mxu0 0.0
      %336 = vmatpush1.msra.mxu0 0.0
      %337 = vmatprep.subr.mxu0 0.0
      %338 = vmatpush1.msra.mxu0 0.0
      %339 = vmatprep.subr.mxu0 0.0
      %340 = vmatpush1.msra.mxu0 0.0
      %341 = vmatprep.subr.mxu0 0.0
      %342 = vmatpush1.msra.mxu0 0.0
      %343 = vmatprep.subr.mxu0 0.0
      %344 = vmatpush1.msra.mxu0 0.0
      %345 = vmatprep.subr.mxu0 0.0
      %346 = vmatpush1.msra.mxu0 0.0
      %347 = vmatprep.subr.mxu0 0.0
      %348 = vmatpush1.msra.mxu0 0.0
      %349 = vmatprep.subr.mxu0 0.0
      %350 = vmatpush1.msra.mxu0 0.0
      %351 = vmatprep.subr.mxu0 0.0
      %352 = vmatpush1.msra.mxu0 0.0
      %353 = vmatprep.mubr.f32.mxu0 0.0
      %354 = vmatmul.mubr.f32.gmra.mrb[0].mxu0 %v283
      %v355 = vpop.f32.mrb[0].mxu0
      %v356 = vadd.f32 0.0, %v355
      %v357 = vpop.f32.mrb[0].mxu0
      %358 = vdwg.mxu0
      %v359 = vadd.f32 %v288, %v356
      %v360 = vtanh.pop %v359
      %s361 = scalar_lea.vmem [#allocation7], %s286
      %362 = vst [vmem:[%s361] sm:$0xff] %v360
      %s363 = sadd.s32 %s209, 16
      %s364 = scalar_lea.vmem [#allocation3], %s363
      %v365 = vld [vmem:[%s364] sm:$0xff]
      %366 = vmatprep.subr.mxu0 0.0
      %367 = vmatpush1.msra.mxu0 %v185
      %368 = vmatprep.subr.mxu0 0.0
      %369 = vmatpush1.msra.mxu0 %v186
      %370 = vmatprep.subr.mxu0 0.0
      %371 = vmatpush1.msra.mxu0 %v187
      %372 = vmatprep.subr.mxu0 0.0
      %373 = vmatpush1.msra.mxu0 %v188
      %374 = vmatprep.subr.mxu0 0.0
      %375 = vmatpush1.msra.mxu0 %v189
      %376 = vmatprep.subr.mxu0 0.0
      %377 = vmatpush1.msra.mxu0 %v190
      %378 = vmatprep.subr.mxu0 0.0
      %379 = vmatpush1.msra.mxu0 %v191
      %380 = vmatprep.subr.mxu0 0.0
      %381 = vmatpush1.msra.mxu0 %v192
      %382 = vmatprep.subr.mxu0 0.0
      %383 = vmatpush1.msra.mxu0 %v193
      %384 = vmatprep.subr.mxu0 0.0
      %385 = vmatpush1.msra.mxu0 %v194
      %386 = vmatprep.subr.mxu0 0.0
      %387 = vmatpush1.msra.mxu0 %v195
      %388 = vmatprep.subr.mxu0 0.0
      %389 = vmatpush1.msra.mxu0 %v196
      %390 = vmatprep.subr.mxu0 0.0
      %391 = vmatpush1.msra.mxu0 %v197
      %392 = vmatprep.subr.mxu0 0.0
      %393 = vmatpush1.msra.mxu0 %v198
      %394 = vmatprep.subr.mxu0 0.0
      %395 = vmatpush1.msra.mxu0 %v199
      %396 = vmatprep.subr.mxu0 0.0
      %397 = vmatpush1.msra.mxu0 %v200
      %398 = vmatprep.subr.mxu0 0.0
      %399 = vmatpush1.msra.mxu0 0.0
      %400 = vmatprep.subr.mxu0 0.0
      %401 = vmatpush1.msra.mxu0 0.0
      %402 = vmatprep.subr.mxu0 0.0
      %403 = vmatpush1.msra.mxu0 0.0
      %404 = vmatprep.subr.mxu0 0.0
      %405 = vmatpush1.msra.mxu0 0.0
      %406 = vmatprep.subr.mxu0 0.0
      %407 = vmatpush1.msra.mxu0 0.0
      %408 = vmatprep.subr.mxu0 0.0
      %409 = vmatpush1.msra.mxu0 0.0
      %410 = vmatprep.subr.mxu0 0.0
      %411 = vmatpush1.msra.mxu0 0.0
      %412 = vmatprep.subr.mxu0 0.0
      %413 = vmatpush1.msra.mxu0 0.0
      %414 = vmatprep.subr.mxu0 0.0
      %415 = vmatpush1.msra.mxu0 0.0
      %416 = vmatprep.subr.mxu0 0.0
      %417 = vmatpush1.msra.mxu0 0.0
      %418 = vmatprep.subr.mxu0 0.0
      %419 = vmatpush1.msra.mxu0 0.0
      %420 = vmatprep.subr.mxu0 0.0
      %421 = vmatpush1.msra.mxu0 0.0
      %422 = vmatprep.subr.mxu0 0.0
      %423 = vmatpush1.msra.mxu0 0.0
      %424 = vmatprep.subr.mxu0 0.0
      %425 = vmatpush1.msra.mxu0 0.0
      %426 = vmatprep.subr.mxu0 0.0
      %427 = vmatpush1.msra.mxu0 0.0
      %428 = vmatprep.subr.mxu0 0.0
      %429 = vmatpush1.msra.mxu0 0.0
      %430 = vmatprep.mubr.f32.mxu0 0.0
      %431 = vmatmul.mubr.f32.gmra.mrb[0].mxu0 %v360
      %v432 = vpop.f32.mrb[0].mxu0
      %v433 = vadd.f32 0.0, %v432
      %v434 = vpop.f32.mrb[0].mxu0
      %435 = vdwg.mxu0
      %v436 = vadd.f32 %v365, %v433
      %v437 = vtanh.pop %v436
      %s438 = scalar_lea.vmem [#allocation7], %s363
      %439 = vst [vmem:[%s438] sm:$0xff] %v437
      %s440 = sadd.s32 %s209, 24
      %s441 = scalar_lea.vmem [#allocation3], %s440
      %v442 = vld [vmem:[%s441] sm:$0xff]
      %443 = vmatprep.subr.mxu0 0.0
      %444 = vmatpush1.msra.mxu0 %v185
      %445 = vmatprep.subr.mxu0 0.0
      %446 = vmatpush1.msra.mxu0 %v186
      %447 = vmatprep.subr.mxu0 0.0
      %448 = vmatpush1.msra.mxu0 %v187
      %449 = vmatprep.subr.mxu0 0.0
      %450 = vmatpush1.msra.mxu0 %v188
      %451 = vmatprep.subr.mxu0 0.0
      %452 = vmatpush1.msra.mxu0 %v189
      %453 = vmatprep.subr.mxu0 0.0
      %454 = vmatpush1.msra.mxu0 %v190
      %455 = vmatprep.subr.mxu0 0.0
      %456 = vmatpush1.msra.mxu0 %v191
      %457 = vmatprep.subr.mxu0 0.0
      %458 = vmatpush1.msra.mxu0 %v192
      %459 = vmatprep.subr.mxu0 0.0
      %460 = vmatpush1.msra.mxu0 %v193
      %461 = vmatprep.subr.mxu0 0.0
      %462 = vmatpush1.msra.mxu0 %v194
      %463 = vmatprep.subr.mxu0 0.0
      %464 = vmatpush1.msra.mxu0 %v195
      %465 = vmatprep.subr.mxu0 0.0
      %466 = vmatpush1.msra.mxu0 %v196
      %467 = vmatprep.subr.mxu0 0.0
      %468 = vmatpush1.msra.mxu0 %v197
      %469 = vmatprep.subr.mxu0 0.0
      %470 = vmatpush1.msra.mxu0 %v198
      %471 = vmatprep.subr.mxu0 0.0
      %472 = vmatpush1.msra.mxu0 %v199
      %473 = vmatprep.subr.mxu0 0.0
      %474 = vmatpush1.msra.mxu0 %v200
      %475 = vmatprep.subr.mxu0 0.0
      %476 = vmatpush1.msra.mxu0 0.0
      %477 = vmatprep.subr.mxu0 0.0
      %478 = vmatpush1.msra.mxu0 0.0
      %479 = vmatprep.subr.mxu0 0.0
      %480 = vmatpush1.msra.mxu0 0.0
      %481 = vmatprep.subr.mxu0 0.0
      %482 = vmatpush1.msra.mxu0 0.0
      %483 = vmatprep.subr.mxu0 0.0
      %484 = vmatpush1.msra.mxu0 0.0
      %485 = vmatprep.subr.mxu0 0.0
      %486 = vmatpush1.msra.mxu0 0.0
      %487 = vmatprep.subr.mxu0 0.0
      %488 = vmatpush1.msra.mxu0 0.0
      %489 = vmatprep.subr.mxu0 0.0
      %490 = vmatpush1.msra.mxu0 0.0
      %491 = vmatprep.subr.mxu0 0.0
      %492 = vmatpush1.msra.mxu0 0.0
      %493 = vmatprep.subr.mxu0 0.0
      %494 = vmatpush1.msra.mxu0 0.0
      %495 = vmatprep.subr.mxu0 0.0
      %496 = vmatpush1.msra.mxu0 0.0
      %497 = vmatprep.subr.mxu0 0.0
      %498 = vmatpush1.msra.mxu0 0.0
      %499 = vmatprep.subr.mxu0 0.0
      %500 = vmatpush1.msra.mxu0 0.0
      %501 = vmatprep.subr.mxu0 0.0
      %502 = vmatpush1.msra.mxu0 0.0
      %503 = vmatprep.subr.mxu0 0.0
      %504 = vmatpush1.msra.mxu0 0.0
      %505 = vmatprep.subr.mxu0 0.0
      %506 = vmatpush1.msra.mxu0 0.0
      %507 = vmatprep.mubr.f32.mxu0 0.0
      %508 = vmatmul.mubr.f32.gmra.mrb[0].mxu0 %v437
      %v509 = vpop.f32.mrb[0].mxu0
      %v510 = vadd.f32 0.0, %v509
      %v511 = vpop.f32.mrb[0].mxu0
      %512 = vdwg.mxu0
      %v513 = vadd.f32 %v442, %v510
      %v514 = vtanh.pop %v513
      %s515 = scalar_lea.vmem [#allocation7], %s440
      %516 = vst [vmem:[%s515] sm:$0xff] %v514
    $region26: #{tpu_custom_call.1} parent=1 // loop_footer
      %s207 = sadd.s32 1, %s203
    $region27: #{tpu_custom_call.1} parent=1 // loop_footer_branch
      %202 = sbr.rel target = $region23
    $region28: #{tpu_custom_call.1} parent=1 // loop_exit
      _
    %517 = vst [vmem:[#allocation2] sm:$0xff] %v208
    // Predicated region
    $region29: #{tpu_custom_call.1} parent=1 // pred_check
      _
    $region30: #{tpu_custom_call.1} parent=1 // pred_check_branch
      %519 = sbr.rel (0) target = $region32
    $region31: #{tpu_custom_call.1} parent=1 // pred_region
      %s521 = ssub.s32 1024, 1024
      %522 = vsyncadd [#allocation6], %s521
      %s523 = sshll.u32 [#allocation7], 4
      %s524 = int_to_ptr.vmem [resolvable:$true] %s523
      %529 = dma.vmem_to_hbm [thread:$0]  %s524, 1024, %s3, [#allocation6], 128, 128, 8
    $region32: #{tpu_custom_call.1} parent=1 // pred_fallthru
      _
    // Predicated region
    $region33: #{tpu_custom_call.1} parent=1 // pred_check
      _
    $region34: #{tpu_custom_call.1} parent=1 // pred_check_branch
      %531 = sbr.rel (0) target = $region36
    $region35: #{tpu_custom_call.1} parent=1 // pred_region
      %532 = dma.done [#allocation6], 1024
    $region36: #{tpu_custom_call.1} parent=1 // pred_fallthru
      _
    %533 = vsyncpa [#allocation5], 1
    %534 = vsyncpa [#allocation6], 1

</llo_original>
